<compile_context>
chip_gen: v6e
topology: v6e:2x2x1
jax: 0.10.0
libtpu: 0.0.40
codegen_flags: <defaults>
</compile_context>

<pallas_src>
import jax
import jax.numpy as jnp
from jax import lax
from jax.experimental import pallas as pl
from jax.experimental.pallas import tpu as pltpu


def _round_up(x, m):
    return ((x + m - 1) // m) * m


def _vmem_cap_bytes():
    """Generation-aware VMEM ceiling (~80% of physical, leaves Mosaic headroom)."""
    try:
        phys = int(pltpu.get_tpu_info().vmem_capacity_bytes)
    except Exception:  # conservative default = v7x physical VMEM
        phys = 64 << 20
    return max(32 << 20, int(phys * 0.8))


def _vmem_estimate(tile_n, vp, vc, v, logits_itemsize):
    """Rough per-kernel VMEM footprint (bytes)."""
    return (4 * vp * vc                           # resident augmented table (1x buffer)
            + 2 * tile_n * v * logits_itemsize    # logits tile x2 pipeline buffers
            + 6 * 4 * tile_n * vp                 # one-hot / iota / select temporaries
            + 2 * 4 * 3 * tile_n)                 # tok / tgt / nll tiles x2 buffers


# ----------------------------- kernels ---------------------------------------


def _onehot_logits_full(tok_ref, emb_ref):
    """Row gather as one-hot @ table on the MXU. Returns the full (tile_n, V+1) result
    (last column of the augmented table holds the per-row logsumexp)."""
    tile_n = tok_ref.shape[0]
    k = emb_ref.shape[0]                                   # padded vocab rows (MXU K)
    col = lax.broadcasted_iota(jnp.int32, (tile_n, k), 1)
    onehot = (col == tok_ref[...]).astype(jnp.float32)     # (tile_n, K)
    return jnp.dot(onehot, emb_ref[...], preferred_element_type=jnp.float32)


def _nll_from_full(full, tgt_ref, ncols):
    """nll[i] = logsumexp(row_tok[i]) - logit[i, tgt[i]]; lse sits in column ncols-1.
    Single fused select + cross-lane reduce."""
    col = lax.broadcasted_iota(jnp.int32, full.shape, 1)
    contrib = jnp.where(col == tgt_ref[...], -full,
                        jnp.where(col == ncols - 1, full, 0.0))
    return jnp.sum(contrib, axis=-1, keepdims=True)


def bigram_logits_kernel(tok_ref, emb_ref, logits_ref):
    v = logits_ref.shape[1]
    full = _onehot_logits_full(tok_ref, emb_ref)           # (tile_n, V+1)
    logits_ref[...] = full[:, :v].astype(logits_ref.dtype)


def bigram_loss_kernel(tok_ref, tgt_ref, emb_ref, logits_ref, nll_ref):
    v = logits_ref.shape[1]
    full = _onehot_logits_full(tok_ref, emb_ref)           # (tile_n, V+1)
    logits_ref[...] = full[:, :v].astype(logits_ref.dtype)
    nll_ref[...] = _nll_from_full(full, tgt_ref, emb_ref.shape[1])


def bigram_loss_only_kernel(tok_ref, tgt_ref, emb_ref, nll_ref):
    full = _onehot_logits_full(tok_ref, emb_ref)
    nll_ref[...] = _nll_from_full(full, tgt_ref, emb_ref.shape[1])


# ----------------------------- wrapper ---------------------------------------


def prepare_bigram_params(emb_table):
    """One-time table prep (hoisted out of forward / cached across calls):
    f32 cast, append per-row logsumexp column, pad token-id rows (the one-hot
    lane / MXU-K dim) to a multiple of 128. Padded rows are never selected."""
    V = int(emb_table.shape[0])
    VP = _round_up(V, 128)
    emb = emb_table.astype(jnp.float32)
    lse = jax.nn.logsumexp(emb, axis=-1, keepdims=True)          # (V, 1)
    aug = jnp.concatenate([emb, lse], axis=-1)                   # (V, V+1)
    aug = jnp.pad(aug, ((0, VP - V), (0, 0)))                    # (VP, V+1)
    return {"table": aug, "vocab_size": V}


def bigram_forward(tokens, params, targets=None, *, tile_n=2048,
                   logits_dtype=jnp.float32, return_logits=True):
    """Replicates BigramModel.forward: returns (logits, loss).

    `params` is either the raw (V, V) embedding table or the dict returned by
    prepare_bigram_params (preferred: the O(V^2) prep is then paid once).
    return_logits=False (with targets) runs a loss-only kernel that skips the
    dominant logits HBM writeback; logits_dtype=jnp.bfloat16 halves it instead
    (diverges from f32 PyTorch numerics, so opt-in).
    """
    if not isinstance(params, dict):
        params = prepare_bigram_params(params)
    table = params["table"]
    V = params["vocab_size"]
    VP, VC = table.shape                                         # (round_up(V,128), V+1)

    B, T = tokens.shape
    N = B * T
    itemsize = jnp.dtype(logits_dtype).itemsize
    cap = _vmem_cap_bytes()

    # >= 2 tiles so the "parallel" axis feeds both TensorCores on v7x; shrink further
    # if the VMEM estimate would not fit under the generation cap.
    tile_n = max(8, min(int(tile_n), _round_up(pl.cdiv(N, 2), 8)))
    while tile_n > 256 and int(1.5 * _vmem_estimate(tile_n, VP, VC, V, itemsize)) > cap:
        tile_n = _round_up(tile_n // 2, 8)
    n_pad = _round_up(N, tile_n)
    num_tiles = n_pad // tile_n

    vmem_limit = int(min(max(1.5 * _vmem_estimate(tile_n, VP, VC, V, itemsize),
                             8 << 20), cap))
    compiler_params = pltpu.CompilerParams(
        dimension_semantics=("parallel",),
        vmem_limit_bytes=vmem_limit)

    tok = jnp.pad(tokens.reshape(N, 1).astype(jnp.int32), ((0, n_pad - N), (0, 0)))

    tok_spec = pl.BlockSpec((tile_n, 1), lambda i: (i, 0))
    nll_spec = pl.BlockSpec((tile_n, 1), lambda i: (i, 0))
    logits_spec = pl.BlockSpec((tile_n, V), lambda i: (i, 0))    # unpadded vocab axis

    def table_spec(single_buffer):
        # Constant index_map => VMEM-resident (never re-DMA'd). Single-buffer it so
        # its footprint is 1x (important for large V on v7x's 64 MiB VMEM).
        if single_buffer:
            return pl.BlockSpec((VP, VC), lambda i: (0, 0),
                                pipeline_mode=pl.Buffered(1))
        return pl.BlockSpec((VP, VC), lambda i: (0, 0))

    def run(kernel, in_arrays, data_in_specs, out_specs, out_shape):
        def build(single_buffer):
            return pl.pallas_call(
                kernel,
                grid_spec=pltpu.PrefetchScalarGridSpec(
                    num_scalar_prefetch=0,
                    grid=(num_tiles,),
                    in_specs=list(data_in_specs) + [table_spec(single_buffer)],
                    out_specs=out_specs),
                out_shape=out_shape,
                compiler_params=compiler_params)
        try:
            return build(True)(*in_arrays)
        except Exception:
            # Fallback: let Pallas default-double-buffer the resident table.
            return build(False)(*in_arrays)

    if targets is None:
        logits_pad = run(bigram_logits_kernel, (tok, table), [tok_spec],
                         logits_spec,
                         jax.ShapeDtypeStruct((n_pad, V), logits_dtype))
        logits = logits_pad if n_pad == N else logits_pad[:N]
        return logits.reshape(B, T, V), None

    tgt = jnp.pad(targets.reshape(N, 1).astype(jnp.int32), ((0, n_pad - N), (0, 0)))

    if return_logits:
        logits_pad, nll = run(
            bigram_loss_kernel, (tok, tgt, table), [tok_spec, tok_spec],
            (logits_spec, nll_spec),
            (jax.ShapeDtypeStruct((n_pad, V), logits_dtype),
             jax.ShapeDtypeStruct((n_pad, 1), jnp.float32)))
        logits = logits_pad if n_pad == N else logits_pad[:N]
        logits = logits.reshape(B, T, V)
    else:
        nll = run(bigram_loss_only_kernel, (tok, tgt, table), [tok_spec, tok_spec],
                  nll_spec, jax.ShapeDtypeStruct((n_pad, 1), jnp.float32))
        logits = None

    loss = jnp.mean(nll[:N, 0])
    return logits, loss


if __name__ == "__main__":
    VOCAB = 32
    B, T = 2, 8

    key = jax.random.PRNGKey(0)
    k_emb, k_tok, k_tgt = jax.random.split(key, 3)

    # Deterministic parameter init (nn.Embedding(vocab, vocab) weight ~ N(0, 1)).
    emb_table = jax.random.normal(k_emb, (VOCAB, VOCAB), dtype=jnp.float32)
    tokens = jax.random.randint(k_tok, (B, T), 0, VOCAB, dtype=jnp.int32)
    targets = jax.random.randint(k_tgt, (B, T), 0, VOCAB, dtype=jnp.int32)

    # One-time table prep, cached across forward calls.
    params = prepare_bigram_params(emb_table)

    logits, loss = bigram_forward(tokens, params, targets)
    logits = jax.block_until_ready(logits)
    loss = jax.block_until_ready(loss)

    # Pure-JAX reference of the PyTorch forward semantics.
    ref_logits = emb_table[tokens]                                   # (B, T, V)
    ref_logp = jax.nn.log_softmax(ref_logits, axis=-1)
    ref_loss = -jnp.mean(
        jnp.take_along_axis(ref_logp, targets[..., None], axis=-1))

    assert logits.shape == (B, T, VOCAB) and logits.dtype == jnp.float32
    assert jnp.allclose(logits, ref_logits, atol=1e-5, rtol=1e-5)
    assert jnp.allclose(loss, ref_loss, atol=1e-5, rtol=1e-5)

    # targets=None path returns (logits, None), mirroring PyTorch.
    logits_only, none_loss = bigram_forward(tokens, params, None)
    jax.block_until_ready(logits_only)
    assert none_loss is None
    assert jnp.allclose(logits_only, ref_logits, atol=1e-5, rtol=1e-5)

    # Loss-only path (skips the logits HBM writeback entirely).
    no_logits, loss2 = bigram_forward(tokens, params, targets, return_logits=False)
    jax.block_until_ready(loss2)
    assert no_logits is None
    assert jnp.allclose(loss2, ref_loss, atol=1e-5, rtol=1e-5)

    # Raw-table convenience path (prep done on the fly) still matches.
    logits3, loss3 = bigram_forward(tokens, emb_table, targets)
    jax.block_until_ready(loss3)
    assert jnp.allclose(logits3, ref_logits, atol=1e-5, rtol=1e-5)
    assert jnp.allclose(loss3, ref_loss, atol=1e-5, rtol=1e-5)

    print("KERNEL_OK")
</pallas_src>

<mosaic_0001>
module attributes {stable_mosaic.version = 11 : i64} {
  func.func @bigram_loss_kernel(%arg0: i32, %arg1: memref<8x1xi32, #tpu.memory_space<vmem>>, %arg2: memref<8x1xi32, #tpu.memory_space<vmem>>, %arg3: memref<128x33xf32, #tpu.memory_space<vmem>>, %arg4: memref<8x32xf32, #tpu.memory_space<vmem>>, %arg5: memref<8x1xf32, #tpu.memory_space<vmem>>) attributes {dimension_semantics = [#tpu.dimension_semantics<parallel>], iteration_bounds = array<i64: 2>, scalar_prefetch = 0 : i64, scratch_operands = 0 : i64, tpu.core_type = #tpu.core_type<tc>, window_params = [{transform_indices = @transform_0, window_bounds = array<i64: 8, 1>}, {transform_indices = @transform_1, window_bounds = array<i64: 8, 1>}, {pipeline_mode = #tpu.pipeline_mode<synchronous>, transform_indices = @transform_2, window_bounds = array<i64: 128, 33>}, {transform_indices = @transform_3, window_bounds = array<i64: 8, 32>}, {transform_indices = @transform_4, window_bounds = array<i64: 8, 1>}]} {
    %0 = tpu.iota {dimensions = array<i32: 1>} : vector<8x128xi32>
    %c0 = arith.constant 0 : index
    %c0_0 = arith.constant 0 : index
    %1 = vector.load %arg1[%c0, %c0_0] : memref<8x1xi32, #tpu.memory_space<vmem>>, vector<8x1xi32>
    %2 = vector.broadcast %1 : vector<8x1xi32> to vector<8x128xi32>
    %3 = arith.cmpi eq, %0, %2 : vector<8x128xi32>
    %4 = arith.extui %3 : vector<8x128xi1> to vector<8x128xi32>
    %5 = arith.sitofp %4 : vector<8x128xi32> to vector<8x128xf32>
    %c0_1 = arith.constant 0 : index
    %c0_2 = arith.constant 0 : index
    %6 = vector.load %arg3[%c0_1, %c0_2] : memref<128x33xf32, #tpu.memory_space<vmem>>, vector<128x33xf32>
    %cst = arith.constant dense<0.000000e+00> : vector<8x33xf32>
    %7 = tpu.matmul %5, %6, %cst {dimension_numbers = #tpu.dot_dimension_numbers<[1], [0], [0], [1], [0, 0, 1, 1], [], []>} : vector<8x128xf32>, vector<128x33xf32>, vector<8x33xf32> -> vector<8x33xf32>
    %8 = vector.extract_strided_slice %7 {offsets = [0, 0], sizes = [8, 32], strides = [1, 1]} : vector<8x33xf32> to vector<8x32xf32>
    %c0_3 = arith.constant 0 : index
    %c0_4 = arith.constant 0 : index
    %9 = vector.load %arg4[%c0_3, %c0_4] : memref<8x32xf32, #tpu.memory_space<vmem>>, vector<8x32xf32>
    tpu.vector_store %arg4[%c0_3, %c0_4], %8 {strides = array<i32>} : memref<8x32xf32, #tpu.memory_space<vmem>>, vector<8x32xf32>,
    %10 = tpu.iota {dimensions = array<i32: 1>} : vector<8x33xi32>
    %c0_5 = arith.constant 0 : index
    %c0_6 = arith.constant 0 : index
    %11 = vector.load %arg2[%c0_5, %c0_6] : memref<8x1xi32, #tpu.memory_space<vmem>>, vector<8x1xi32>
    %12 = vector.broadcast %11 : vector<8x1xi32> to vector<8x33xi32>
    %13 = arith.cmpi eq, %10, %12 : vector<8x33xi32>
    %cst_7 = arith.constant 0.000000e+00 : f32
    %14 = vector.broadcast %cst_7 : f32 to vector<8x33xf32>
    %15 = arith.subf %14, %7 : vector<8x33xf32>
    %c32_i32 = arith.constant 32 : i32
    %16 = vector.broadcast %c32_i32 : i32 to vector<8x33xi32>
    %17 = arith.cmpi eq, %10, %16 : vector<8x33xi32>
    %cst_8 = arith.constant 0.000000e+00 : f32
    %18 = vector.broadcast %cst_8 : f32 to vector<8x33xf32>
    %19 = arith.select %17, %7, %18 : vector<8x33xi1>, vector<8x33xf32>
    %20 = arith.select %13, %15, %19 : vector<8x33xi1>, vector<8x33xf32>
    %cst_9 = arith.constant dense<0.000000e+00> : vector<8xf32>
    %21 = vector.multi_reduction <add>, %20, %cst_9 [1] : vector<8x33xf32> to vector<8xf32>
    %22 = vector.shape_cast %21 : vector<8xf32> to vector<8x1xf32>
    %c0_10 = arith.constant 0 : index
    %c0_11 = arith.constant 0 : index
    %23 = vector.load %arg5[%c0_10, %c0_11] : memref<8x1xf32, #tpu.memory_space<vmem>>, vector<8x1xf32>
    tpu.vector_store %arg5[%c0_10, %c0_11], %22 {strides = array<i32>} : memref<8x1xf32, #tpu.memory_space<vmem>>, vector<8x1xf32>,
    return
  }
  func.func @transform_0(%arg0: i32) -> (i32, i32) {
    %c0_i32 = arith.constant 0 : i32
    %c0_i32_0 = arith.constant 0 : i32
    return %arg0, %c0_i32 : i32, i32
  }
  func.func @transform_1(%arg0: i32) -> (i32, i32) {
    %c0_i32 = arith.constant 0 : i32
    %c0_i32_0 = arith.constant 0 : i32
    return %arg0, %c0_i32 : i32, i32
  }
  func.func @transform_2(%arg0: i32) -> (i32, i32) {
    %c0_i32 = arith.constant 0 : i32
    %c0_i32_0 = arith.constant 0 : i32
    %c0_i32_1 = arith.constant 0 : i32
    return %c0_i32, %c0_i32_0 : i32, i32
  }
  func.func @transform_3(%arg0: i32) -> (i32, i32) {
    %c0_i32 = arith.constant 0 : i32
    %c0_i32_0 = arith.constant 0 : i32
    return %arg0, %c0_i32 : i32, i32
  }
  func.func @transform_4(%arg0: i32) -> (i32, i32) {
    %c0_i32 = arith.constant 0 : i32
    %c0_i32_0 = arith.constant 0 : i32
    return %arg0, %c0_i32 : i32, i32
  }
}

module attributes {stable_mosaic.version = 11 : i64} {
  func.func @bigram_loss_kernel(%arg0: i32, %arg1: memref<8x1xi32, #tpu.memory_space<vmem>>, %arg2: memref<8x1xi32, #tpu.memory_space<vmem>>, %arg3: memref<128x33xf32, #tpu.memory_space<vmem>>, %arg4: memref<8x32xf32, #tpu.memory_space<vmem>>, %arg5: memref<8x1xf32, #tpu.memory_space<vmem>>) attributes {dimension_semantics = [#tpu.dimension_semantics<parallel>], iteration_bounds = array<i64: 2>, scalar_prefetch = 0 : i64, scratch_operands = 0 : i64, tpu.core_type = #tpu.core_type<tc>, window_params = [{transform_indices = @transform_0, window_bounds = array<i64: 8, 1>}, {transform_indices = @transform_1, window_bounds = array<i64: 8, 1>}, {pipeline_mode = #tpu.pipeline_mode<synchronous>, transform_indices = @transform_2, window_bounds = array<i64: 128, 33>}, {transform_indices = @transform_3, window_bounds = array<i64: 8, 32>}, {transform_indices = @transform_4, window_bounds = array<i64: 8, 1>}]} {
    %0 = tpu.iota {dimensions = array<i32: 1>} : vector<8x128xi32>
    %c0 = arith.constant 0 : index
    %c0_0 = arith.constant 0 : index
    %1 = vector.load %arg1[%c0, %c0_0] : memref<8x1xi32, #tpu.memory_space<vmem>>, vector<8x1xi32>
    %2 = vector.broadcast %1 : vector<8x1xi32> to vector<8x128xi32>
    %3 = arith.cmpi eq, %0, %2 : vector<8x128xi32>
    %4 = arith.extui %3 : vector<8x128xi1> to vector<8x128xi32>
    %5 = arith.sitofp %4 : vector<8x128xi32> to vector<8x128xf32>
    %c0_1 = arith.constant 0 : index
    %c0_2 = arith.constant 0 : index
    %6 = vector.load %arg3[%c0_1, %c0_2] : memref<128x33xf32, #tpu.memory_space<vmem>>, vector<128x33xf32>
    %cst = arith.constant dense<0.000000e+00> : vector<8x33xf32>
    %7 = tpu.matmul %5, %6, %cst {dimension_numbers = #tpu.dot_dimension_numbers<[1], [0], [0], [1], [0, 0, 1, 1], [], []>} : vector<8x128xf32>, vector<128x33xf32>, vector<8x33xf32> -> vector<8x33xf32>
    %8 = vector.extract_strided_slice %7 {offsets = [0, 0], sizes = [8, 32], strides = [1, 1]} : vector<8x33xf32> to vector<8x32xf32>
    %c0_3 = arith.constant 0 : index
    %c0_4 = arith.constant 0 : index
    %9 = vector.load %arg4[%c0_3, %c0_4] : memref<8x32xf32, #tpu.memory_space<vmem>>, vector<8x32xf32>
    tpu.vector_store %arg4[%c0_3, %c0_4], %8 {strides = array<i32>} : memref<8x32xf32, #tpu.memory_space<vmem>>, vector<8x32xf32>,
    %10 = tpu.iota {dimensions = array<i32: 1>} : vector<8x33xi32>
    %c0_5 = arith.constant 0 : index
    %c0_6 = arith.constant 0 : index
    %11 = vector.load %arg2[%c0_5, %c0_6] : memref<8x1xi32, #tpu.memory_space<vmem>>, vector<8x1xi32>
    %12 = vector.broadcast %11 : vector<8x1xi32> to vector<8x33xi32>
    %13 = arith.cmpi eq, %10, %12 : vector<8x33xi32>
    %cst_7 = arith.constant 0.000000e+00 : f32
    %14 = vector.broadcast %cst_7 : f32 to vector<8x33xf32>
    %15 = arith.subf %14, %7 : vector<8x33xf32>
    %c32_i32 = arith.constant 32 : i32
    %16 = vector.broadcast %c32_i32 : i32 to vector<8x33xi32>
    %17 = arith.cmpi eq, %10, %16 : vector<8x33xi32>
    %cst_8 = arith.constant 0.000000e+00 : f32
    %18 = vector.broadcast %cst_8 : f32 to vector<8x33xf32>
    %19 = arith.select %17, %7, %18 : vector<8x33xi1>, vector<8x33xf32>
    %20 = arith.select %13, %15, %19 : vector<8x33xi1>, vector<8x33xf32>
    %cst_9 = arith.constant dense<0.000000e+00> : vector<8xf32>
    %21 = vector.multi_reduction <add>, %20, %cst_9 [1] : vector<8x33xf32> to vector<8xf32>
    %22 = vector.shape_cast %21 : vector<8xf32> to vector<8x1xf32>
    %c0_10 = arith.constant 0 : index
    %c0_11 = arith.constant 0 : index
    %23 = vector.load %arg5[%c0_10, %c0_11] : memref<8x1xf32, #tpu.memory_space<vmem>>, vector<8x1xf32>
    tpu.vector_store %arg5[%c0_10, %c0_11], %22 {strides = array<i32>} : memref<8x1xf32, #tpu.memory_space<vmem>>, vector<8x1xf32>,
    return
  }
  func.func @transform_0(%arg0: i32) -> (i32, i32) {
    %c0_i32 = arith.constant 0 : i32
    %c0_i32_0 = arith.constant 0 : i32
    return %arg0, %c0_i32 : i32, i32
  }
  func.func @transform_1(%arg0: i32) -> (i32, i32) {
    %c0_i32 = arith.constant 0 : i32
    %c0_i32_0 = arith.constant 0 : i32
    return %arg0, %c0_i32 : i32, i32
  }
  func.func @transform_2(%arg0: i32) -> (i32, i32) {
    %c0_i32 = arith.constant 0 : i32
    %c0_i32_0 = arith.constant 0 : i32
    %c0_i32_1 = arith.constant 0 : i32
    return %c0_i32, %c0_i32_0 : i32, i32
  }
  func.func @transform_3(%arg0: i32) -> (i32, i32) {
    %c0_i32 = arith.constant 0 : i32
    %c0_i32_0 = arith.constant 0 : i32
    return %arg0, %c0_i32 : i32, i32
  }
  func.func @transform_4(%arg0: i32) -> (i32, i32) {
    %c0_i32 = arith.constant 0 : i32
    %c0_i32_0 = arith.constant 0 : i32
    return %arg0, %c0_i32 : i32, i32
  }
}

</mosaic_0001>

<llo_original>
// kernel: tpu_custom_call.1
$region0: #{tpu_custom_call.1}
  #allocation0 [shape = 'u32[]', space=smem, size = 0x4, offset = 0x4, fixed_abs, tag = 'smem constant byte address 0x4 - core index']
  #allocation1 [shape = 'u32[144,128]{1,0:T(1,128)}', space=vmem, size = 0x12000, scoped, tag = 'internal scratch']
  %s0 = inlined_call_operand.vmem [shape: s32[16,1], index: 0, kind: input, shape index: {}]
  %s1 = inlined_call_operand.vmem [shape: s32[16,1], index: 1, kind: input, shape index: {}]
  %s2 = inlined_call_operand.vmem [shape: f32[128,33], index: 2, kind: input, shape index: {}]
  %s3 = inlined_call_operand.hbm [shape: f32[16,32], index: 3, kind: output, shape index: {0}]
  %s4 = inlined_call_operand.vmem [shape: f32[16,1], index: 4, kind: output, shape index: {1}]
  %5 = xla_tuple %s3, %s4
  %s6 = sld [smem:[#allocation0]]
  $region53: #{tpu_custom_call.1} parent=0
    _
  %s8 = ssub.s32 1, %s6
  %s9 = scalar_select 0, %s8, %s6
  $region1: #{tpu_custom_call.1} parent=0
    #allocation2 [shape = 'u8[8192]{0}', space=vmem, size = 0x2000, scoped, tag = 'output window, operand 0']
    #allocation3 [shape = 's32[2]{0}', space=sflag, size = 0x8, scoped, tag = 'scoped memory for tpu_custom_call.1']
    %10 = vsyncpa [#allocation3], 0
    %s11 = scalar_lea.sflag [#allocation3], 1
    %12 = vsyncpa %s11, 0
    loop: start=0, step=1, limit=4
    $region2: #{tpu_custom_call.1} parent=1 // loop_pre_header
      _
    $region3: #{tpu_custom_call.1} parent=1 // loop_header
      %s14 = sphi 0, %s18
      %p15 = scmp.ge.s32.totalorder %s14, 4
      %s24 = sphi 0, %s26
      %s27 = sphi 0, %s24
      %s28 = sphi 0, %s27
      %s44 = sphi 0, %s28
      %s50 = sphi 0, %s52
      %s53 = sphi 0, %s50
      %s54 = sphi 0, %s53
      %s70 = sphi 0, %s54
      %s74 = sphi 0, %s74
      %s76 = sphi 0, %s74
      %s77 = sphi 0, %s76
      %s91 = sphi 0, %s77
      %s97 = sphi 0, %s99
      %s100 = sphi 0, %s97
      %s101 = sphi 0, %s100
      %s117 = sphi 0, %s101
      %s123 = sphi 0, %s125
      %s126 = sphi 0, %s123
      %s127 = sphi 0, %s126
      %s143 = sphi 0, %s127
    $region4: #{tpu_custom_call.1} parent=1 // loop_header_branch
      %17 = sbr.rel (%p15) target = $region8
    $region5: #{tpu_custom_call.1} parent=1 // loop_body
      %s19 = ssub.s32 %s14, 1
      %s20 = ssub.s32 %s14, 2
      %s21 = sadd.s32 %s14, 1
      %s22 = ssub.s32 %s14, %s21
      %p23 = scmp.eq.s32.totalorder %s22, 0
      %s25 = sadd.s32 %s24, 1
      %s26 = scalar_select %p23, %s24, %s25
      %p29 = pneg %p23
      %p30 = scmp.eq.s32.totalorder %s14, 1
      %p31 = por %p29, %p30
      %p32 = scmp.ne.s32.totalorder %s24, %s27
      %p33 = scmp.eq.s32.totalorder %s14, 0
      %p34 = por %p32, %p33
      %p35 = scmp.ne.s32.totalorder %s24, %s27
      %p36 = scmp.eq.s32.totalorder %s19, 1
      %p37 = por %p35, %p36
      %p38 = scmp.ne.s32.totalorder %s27, %s28
      %p39 = scmp.eq.s32.totalorder %s19, 0
      %p40 = por %p38, %p39
      %p41 = scmp.ne.s32.totalorder %s27, %s28
      %p42 = scmp.eq.s32.totalorder %s20, 1
      %p43 = por %p41, %p42
      %p45 = scmp.ne.s32.totalorder %s28, %s44
      %p46 = scmp.eq.s32.totalorder %s20, 0
      %p47 = por %p45, %p46
      %s48 = ssub.s32 %s14, %s21
      %p49 = scmp.eq.s32.totalorder %s48, 0
      %s51 = sadd.s32 %s50, 1
      %s52 = scalar_select %p49, %s50, %s51
      %p55 = pneg %p49
      %p56 = scmp.eq.s32.totalorder %s14, 1
      %p57 = por %p55, %p56
      %p58 = scmp.ne.s32.totalorder %s50, %s53
      %p59 = scmp.eq.s32.totalorder %s14, 0
      %p60 = por %p58, %p59
      %p61 = scmp.ne.s32.totalorder %s50, %s53
      %p62 = scmp.eq.s32.totalorder %s19, 1
      %p63 = por %p61, %p62
      %p64 = scmp.ne.s32.totalorder %s53, %s54
      %p65 = scmp.eq.s32.totalorder %s19, 0
      %p66 = por %p64, %p65
      %p67 = scmp.ne.s32.totalorder %s53, %s54
      %p68 = scmp.eq.s32.totalorder %s20, 1
      %p69 = por %p67, %p68
      %p71 = scmp.ne.s32.totalorder %s54, %s70
      %p72 = scmp.eq.s32.totalorder %s20, 0
      %p73 = por %p71, %p72
      %s75 = sadd.s32 %s74, 1
      %p78 = scmp.eq.s32.totalorder %s14, 1
      %p79 = scmp.ne.s32.totalorder %s74, %s76
      %p80 = scmp.eq.s32.totalorder %s14, 0
      %p81 = por %p79, %p80
      %p82 = scmp.ne.s32.totalorder %s74, %s76
      %p83 = scmp.eq.s32.totalorder %s19, 1
      %p84 = por %p82, %p83
      %p85 = scmp.ne.s32.totalorder %s76, %s77
      %p86 = scmp.eq.s32.totalorder %s19, 0
      %p87 = por %p85, %p86
      %p88 = scmp.ne.s32.totalorder %s76, %s77
      %p89 = scmp.eq.s32.totalorder %s20, 1
      %p90 = por %p88, %p89
      %p92 = scmp.ne.s32.totalorder %s77, %s91
      %p93 = scmp.eq.s32.totalorder %s20, 0
      %p94 = por %p92, %p93
      %s95 = ssub.s32 %s14, %s21
      %p96 = scmp.eq.s32.totalorder %s95, 0
      %s98 = sadd.s32 %s97, 1
      %s99 = scalar_select %p96, %s97, %s98
      %p102 = pneg %p96
      %p103 = scmp.eq.s32.totalorder %s14, 1
      %p104 = por %p102, %p103
      %p105 = scmp.ne.s32.totalorder %s97, %s100
      %p106 = scmp.eq.s32.totalorder %s14, 0
      %p107 = por %p105, %p106
      %p108 = scmp.ne.s32.totalorder %s97, %s100
      %p109 = scmp.eq.s32.totalorder %s19, 1
      %p110 = por %p108, %p109
      %p111 = scmp.ne.s32.totalorder %s100, %s101
      %p112 = scmp.eq.s32.totalorder %s19, 0
      %p113 = por %p111, %p112
      %p114 = scmp.ne.s32.totalorder %s100, %s101
      %p115 = scmp.eq.s32.totalorder %s20, 1
      %p116 = por %p114, %p115
      %p118 = scmp.ne.s32.totalorder %s101, %s117
      %p119 = scmp.eq.s32.totalorder %s20, 0
      %p120 = por %p118, %p119
      %s121 = ssub.s32 %s14, %s21
      %p122 = scmp.eq.s32.totalorder %s121, 0
      %s124 = sadd.s32 %s123, 1
      %s125 = scalar_select %p122, %s123, %s124
      %p128 = pneg %p122
      %p129 = scmp.eq.s32.totalorder %s14, 1
      %p130 = por %p128, %p129
      %p131 = scmp.ne.s32.totalorder %s123, %s126
      %p132 = scmp.eq.s32.totalorder %s14, 0
      %p133 = por %p131, %p132
      %p134 = scmp.ne.s32.totalorder %s123, %s126
      %p135 = scmp.eq.s32.totalorder %s19, 1
      %p136 = por %p134, %p135
      %p137 = scmp.ne.s32.totalorder %s126, %s127
      %p138 = scmp.eq.s32.totalorder %s19, 0
      %p139 = por %p137, %p138
      %p140 = scmp.ne.s32.totalorder %s126, %s127
      %p141 = scmp.eq.s32.totalorder %s20, 1
      %p142 = por %p140, %p141
      %p144 = scmp.ne.s32.totalorder %s127, %s143
      %p145 = scmp.eq.s32.totalorder %s20, 0
      %p146 = por %p144, %p145
      %p147 = scmp.le.s32.totalorder 1, %s14
      %p148 = scmp.lt.s32.totalorder %s14, 3
      %p149 = pnand %p147, %p148
      %p150 = pneg %p149
      // Predicated region
      $region9: #{tpu_custom_call.1} parent=5 // pred_check
        _
      $region10: #{tpu_custom_call.1} parent=5 // pred_check_branch
        %152 = sbr.rel (%p149) target = $region12
      $region11: #{tpu_custom_call.1} parent=5 // pred_region
        %s153 = ssub.s32 %s14, 1
        // Predicated region
        $region13: #{tpu_custom_call.1} parent=11 // pred_check
          %p154 = pneg %p87
        $region14: #{tpu_custom_call.1} parent=11 // pred_check_branch
          %156 = sbr.rel (%p154) target = $region16
        $region15: #{tpu_custom_call.1} parent=11 // pred_region
          _
        $region16: #{tpu_custom_call.1} parent=11 // pred_fallthru
          _
      $region12: #{tpu_custom_call.1} parent=5 // pred_fallthru
        _
      %p157 = scmp.lt.s32.totalorder %s14, 2
      // Predicated region
      $region17: #{tpu_custom_call.1} parent=5 // pred_check
        %p158 = pneg %p157
      $region18: #{tpu_custom_call.1} parent=5 // pred_check_branch
        %160 = sbr.rel (%p158) target = $region20
      $region19: #{tpu_custom_call.1} parent=5 // pred_region
        // Predicated region
        $region21: #{tpu_custom_call.1} parent=19 // pred_check
          %p161 = pneg %p34
        $region22: #{tpu_custom_call.1} parent=19 // pred_check_branch
          %163 = sbr.rel (%p161) target = $region24
        $region23: #{tpu_custom_call.1} parent=19 // pred_region
          %p164 = scmp.lt.s32.totalorder %s14, 1
          %s165 = scalar_select %p164, %s14, 1
          %s166 = smul.addr %s165, 8
          %s167 = scalar_lea.vmem %s0, %s166
        $region24: #{tpu_custom_call.1} parent=19 // pred_fallthru
          _
        // Predicated region
        $region25: #{tpu_custom_call.1} parent=19 // pred_check
          %p168 = pneg %p60
        $region26: #{tpu_custom_call.1} parent=19 // pred_check_branch
          %170 = sbr.rel (%p168) target = $region28
        $region27: #{tpu_custom_call.1} parent=19 // pred_region
          %p171 = scmp.lt.s32.totalorder %s14, 1
          %s172 = scalar_select %p171, %s14, 1
          %s173 = smul.addr %s172, 8
          %s174 = scalar_lea.vmem %s1, %s173
        $region28: #{tpu_custom_call.1} parent=19 // pred_fallthru
          _
      $region20: #{tpu_custom_call.1} parent=5 // pred_fallthru
        _
      %p175 = scmp.le.s32.totalorder 1, %s14
      %p176 = scmp.lt.s32.totalorder %s14, 3
      %p177 = pnand %p175, %p176
      %p178 = pneg %p177
      // Predicated region
      $region29: #{tpu_custom_call.1} parent=5 // pred_check
        _
      $region30: #{tpu_custom_call.1} parent=5 // pred_check_branch
        %180 = sbr.rel (%p177) target = $region32
      $region31: #{tpu_custom_call.1} parent=5 // pred_region
        %s181 = ssub.s32 %s14, 1
        %p182 = scmp.lt.s32.totalorder %s19, 1
        %s183 = scalar_select %p182, %s19, 1
        %s184 = smul.addr %s183, 8
        %s185 = scalar_lea.vmem %s0, %s184
        %p186 = pneg %p40
        %p187 = pneg %p37
        %p188 = scmp.lt.s32.totalorder %s19, 1
        %s189 = scalar_select %p188, %s19, 1
        %s190 = smul.addr %s189, 8
        %s191 = scalar_lea.vmem %s1, %s190
        %p192 = pneg %p66
        %p193 = pneg %p63
        %p194 = pneg %p87
        %p195 = pneg %p84
        %p196 = pneg %p113
        %p197 = pneg %p110
        %s198 = sand.u32 %s100, 1
        %s199 = scalar_lea.sflag [#allocation3], %s198
        %s200 = sand.u32 %s100, 1
        %s201 = smul.addr %s200, 8
        %s202 = scalar_lea.vmem [#allocation2], %s201
        %p203 = pneg %p139
        %p204 = pneg %p136
        %p205 = scmp.lt.s32.totalorder %s19, 1
        %s206 = scalar_select %p205, %s19, 1
        %s207 = smul.addr %s206, 8
        %s208 = scalar_lea.vmem %s4, %s207
        %p209 = scmp.lt.s32.totalorder %s19, 1
        %s210 = scalar_select %p209, %s19, 1
        %s211 = smul.addr %s210, 8
        %s212 = scalar_lea.vmem %s0, %s211
        %p213 = scmp.lt.s32.totalorder %s19, 1
        %s214 = scalar_select %p213, %s19, 1
        %s215 = smul.addr %s214, 8
        %s216 = scalar_lea.vmem %s1, %s215
        %p217 = scmp.lt.s32.totalorder %s19, 1
        %s218 = scalar_select %p217, %s19, 1
        %s219 = smul.addr %s218, 8
        %s220 = scalar_lea.vmem %s4, %s219
        %v221 = vlaneseq
        %v222 = vand.u32 %v221, 127
        %v223 = vld [vmem:[%s212] sm:$0xff]
        %224 = vset.pattern.permute.xlu0 0
        %225 = vperm.xlu0 %224, %v223
        %v226 = vpop.permute.xlu0 %225
        %vm227 = vcmp.eq.s32.totalorder %v222, %v226
        %v228 = vsel %vm227, 1, 0
        %v229 = vcvt.s32.f32 %v228
        %v230 = vld [vmem:[%s2] sm:$0xff]
        %v231 = vld [vmem:[%s2 + $0x8] sm:$0xff]
        %v232 = vld [vmem:[%s2 + $0x10] sm:$0xff]
        %v233 = vld [vmem:[%s2 + $0x18] sm:$0xff]
        %v234 = vld [vmem:[%s2 + $0x20] sm:$0xff]
        %v235 = vld [vmem:[%s2 + $0x28] sm:$0xff]
        %v236 = vld [vmem:[%s2 + $0x30] sm:$0xff]
        %v237 = vld [vmem:[%s2 + $0x38] sm:$0xff]
        %v238 = vld [vmem:[%s2 + $0x40] sm:$0xff]
        %v239 = vld [vmem:[%s2 + $0x48] sm:$0xff]
        %v240 = vld [vmem:[%s2 + $0x50] sm:$0xff]
        %v241 = vld [vmem:[%s2 + $0x58] sm:$0xff]
        %v242 = vld [vmem:[%s2 + $0x60] sm:$0xff]
        %v243 = vld [vmem:[%s2 + $0x68] sm:$0xff]
        %v244 = vld [vmem:[%s2 + $0x70] sm:$0xff]
        %v245 = vld [vmem:[%s2 + $0x78] sm:$0xff]
        %246 = vmatprep.subr.mxu0 0.0
        %247 = vmatpush1.msra.mxu0 %v245
        %248 = vmatprep.subr.mxu0 0.0
        %249 = vmatpush1.msra.mxu0 %v244
        %250 = vmatprep.subr.mxu0 0.0
        %251 = vmatpush1.msra.mxu0 %v243
        %252 = vmatprep.subr.mxu0 0.0
        %253 = vmatpush1.msra.mxu0 %v242
        %254 = vmatprep.subr.mxu0 0.0
        %255 = vmatpush1.msra.mxu0 %v241
        %256 = vmatprep.subr.mxu0 0.0
        %257 = vmatpush1.msra.mxu0 %v240
        %258 = vmatprep.subr.mxu0 0.0
        %259 = vmatpush1.msra.mxu0 %v239
        %260 = vmatprep.subr.mxu0 0.0
        %261 = vmatpush1.msra.mxu0 %v238
        %262 = vmatprep.subr.mxu0 0.0
        %263 = vmatpush1.msra.mxu0 %v237
        %264 = vmatprep.subr.mxu0 0.0
        %265 = vmatpush1.msra.mxu0 %v236
        %266 = vmatprep.subr.mxu0 0.0
        %267 = vmatpush1.msra.mxu0 %v235
        %268 = vmatprep.subr.mxu0 0.0
        %269 = vmatpush1.msra.mxu0 %v234
        %270 = vmatprep.subr.mxu0 0.0
        %271 = vmatpush1.msra.mxu0 %v233
        %272 = vmatprep.subr.mxu0 0.0
        %273 = vmatpush1.msra.mxu0 %v232
        %274 = vmatprep.subr.mxu0 0.0
        %275 = vmatpush1.msra.mxu0 %v231
        %276 = vmatprep.subr.mxu0 0.0
        %277 = vmatpush1.msra.mxu0 %v230
        %278 = vmatprep.subr.mxu0 0.0
        %279 = vmatpush2.msra.mxu0 0.0
        %280 = vmatprep.subr.mxu0 0.0
        %281 = vmatpush2.msra.mxu0 0.0
        %282 = vmatprep.subr.mxu0 0.0
        %283 = vmatpush2.msra.mxu0 0.0
        %284 = vmatprep.subr.mxu0 0.0
        %285 = vmatpush2.msra.mxu0 0.0
        %286 = vmatprep.subr.mxu0 0.0
        %287 = vmatpush2.msra.mxu0 0.0
        %288 = vmatprep.subr.mxu0 0.0
        %289 = vmatpush2.msra.mxu0 0.0
        %290 = vmatprep.subr.mxu0 0.0
        %291 = vmatpush2.msra.mxu0 0.0
        %292 = vmatprep.subr.mxu0 0.0
        %293 = vmatpush2.msra.mxu0 0.0
        %294 = vmatprep.subr.mxu0 0.0
        %295 = vmatpush2.msra.mxu0 0.0
        %296 = vmatprep.subr.mxu0 0.0
        %297 = vmatpush2.msra.mxu0 0.0
        %298 = vmatprep.subr.mxu0 0.0
        %299 = vmatpush2.msra.mxu0 0.0
        %300 = vmatprep.subr.mxu0 0.0
        %301 = vmatpush2.msra.mxu0 0.0
        %302 = vmatprep.subr.mxu0 0.0
        %303 = vmatpush2.msra.mxu0 0.0
        %304 = vmatprep.subr.mxu0 0.0
        %305 = vmatpush2.msra.mxu0 0.0
        %306 = vmatprep.subr.mxu0 0.0
        %307 = vmatpush2.msra.mxu0 0.0
        %308 = vmatprep.subr.mxu0 0.0
        %309 = vmatpush2.msra.mxu0 0.0
        %310 = vmatprep.mubr.f32.mxu0 0.0
        %311 = vmatmul.mubr.f32.gmra.mxu0 %v229
        %v312 = vpop.f32.mrf.mxu0
        %v313 = vadd.f32 0.0, %v312
        %v314 = vpop.f32.mrf.mxu0
        %315 = vdwg.mxu0
        %vm316 = vcmask 261120
        %317 = vst.msk [vmem:[%s202] sm:$0xff] %vm316, %v313
        %v318 = vld [vmem:[%s216] sm:$0xff]
        %319 = vset.pattern.permute.xlu0 0
        %320 = vperm.xlu0 %319, %v318
        %v321 = vpop.permute.xlu0 %320
        %vm322 = vcmp.eq.s32.totalorder %v222, %v321
        %v323 = vsub.f32 0.0, %v313
        %vm324 = vcmp.eq.s32.totalorder %v222, 32
        %v325 = vsel %vm324, %v313, 0.0
        %v326 = vsel %vm322, %v323, %v325
        %vm327 = vcmask 269312
        %v328 = vsel %vm327, %v326, 0.0
        %329 = vadd.xlane.f32.xlu0 %v328
        %v330 = vpop.xlane.xlu0 %329
        %vm331 = vcmask 7168
        %332 = vst.msk [vmem:[%s220] sm:$0xff] %vm331, %v330
        %s333 = sand.u32 %s100, 1
        %s334 = scalar_lea.sflag [#allocation3], %s333
        %s335 = sand.u32 %s100, 1
        %s336 = smul.addr %s335, 8
        %s337 = scalar_lea.vmem [#allocation2], %s336
        %p338 = scmp.lt.s32.totalorder %s19, 1
        %s339 = scalar_select %p338, %s19, 1
        %s340 = smul.addr %s339, 8
        %s341 = scalar_lea.vmem %s4, %s340
        // Predicated region
        $region33: #{tpu_custom_call.1} parent=31 // pred_check
          %p342 = pneg %p110
        $region34: #{tpu_custom_call.1} parent=31 // pred_check_branch
          %344 = sbr.rel (%p342) target = $region36
        $region35: #{tpu_custom_call.1} parent=31 // pred_region
          %s346 = ssub.s32 128, 128
          %347 = vsyncadd %s334, %s346
          %s348 = smul.addr %s19, 128
          %s349 = scalar_lea.hbm %s3, %s348
          %s351 = sshll.u32 %s337, 4
          %s352 = int_to_ptr.vmem [resolvable:$true] %s351
          %354 = dma.vmem_to_hbm [thread:$0]  %s352, 128, %s349, %s334
        $region36: #{tpu_custom_call.1} parent=31 // pred_fallthru
          _
        // Predicated region
        $region37: #{tpu_custom_call.1} parent=31 // pred_check
          %p355 = pneg %p136
        $region38: #{tpu_custom_call.1} parent=31 // pred_check_branch
          %357 = sbr.rel (%p355) target = $region40
        $region39: #{tpu_custom_call.1} parent=31 // pred_region
          _
        $region40: #{tpu_custom_call.1} parent=31 // pred_fallthru
          _
      $region32: #{tpu_custom_call.1} parent=5 // pred_fallthru
        _
      %p358 = scmp.le.s32.totalorder 2, %s14
      // Predicated region
      $region41: #{tpu_custom_call.1} parent=5 // pred_check
        %p359 = pneg %p358
      $region42: #{tpu_custom_call.1} parent=5 // pred_check_branch
        %361 = sbr.rel (%p359) target = $region44
      $region43: #{tpu_custom_call.1} parent=5 // pred_region
        %s362 = ssub.s32 %s14, 2
        // Predicated region
        $region45: #{tpu_custom_call.1} parent=43 // pred_check
          %p363 = pneg %p116
        $region46: #{tpu_custom_call.1} parent=43 // pred_check_branch
          %365 = sbr.rel (%p363) target = $region48
        $region47: #{tpu_custom_call.1} parent=43 // pred_region
          %s366 = sand.u32 %s101, 1
          %s367 = scalar_lea.sflag [#allocation3], %s366
          %s368 = sand.u32 %s101, 1
          %s369 = smul.addr %s368, 8
          %s370 = scalar_lea.vmem [#allocation2], %s369
          %371 = dma.done %s367, 128
        $region48: #{tpu_custom_call.1} parent=43 // pred_fallthru
          _
        // Predicated region
        $region49: #{tpu_custom_call.1} parent=43 // pred_check
          %p372 = pneg %p142
        $region50: #{tpu_custom_call.1} parent=43 // pred_check_branch
          %374 = sbr.rel (%p372) target = $region52
        $region51: #{tpu_custom_call.1} parent=43 // pred_region
          %p375 = scmp.lt.s32.totalorder %s20, 1
          %s376 = scalar_select %p375, %s20, 1
          %s377 = smul.addr %s376, 8
          %s378 = scalar_lea.vmem %s4, %s377
        $region52: #{tpu_custom_call.1} parent=43 // pred_fallthru
          _
      $region44: #{tpu_custom_call.1} parent=5 // pred_fallthru
        _
    $region6: #{tpu_custom_call.1} parent=1 // loop_footer
      %s18 = sadd.s32 1, %s14
    $region7: #{tpu_custom_call.1} parent=1 // loop_footer_branch
      %13 = sbr.rel target = $region3
    $region8: #{tpu_custom_call.1} parent=1 // loop_exit
      _
    %379 = vsyncpa [#allocation3], 1
    %s380 = scalar_lea.sflag [#allocation3], 1
    %381 = vsyncpa %s380, 1

// kernel: tpu_custom_call.1
$region0: #{tpu_custom_call.1}
  #allocation0 [shape = 'u32[]', space=smem, size = 0x4, offset = 0x4, fixed_abs, tag = 'smem constant byte address 0x4 - core index']
  #allocation1 [shape = 'u32[144,128]{1,0:T(1,128)}', space=vmem, size = 0x12000, scoped, tag = 'internal scratch']
  %s0 = inlined_call_operand.vmem [shape: s32[16,1], index: 0, kind: input, shape index: {}]
  %s1 = inlined_call_operand.vmem [shape: s32[16,1], index: 1, kind: input, shape index: {}]
  %s2 = inlined_call_operand.vmem [shape: f32[128,33], index: 2, kind: input, shape index: {}]
  %s3 = inlined_call_operand.hbm [shape: f32[16,32], index: 3, kind: output, shape index: {0}]
  %s4 = inlined_call_operand.vmem [shape: f32[16,1], index: 4, kind: output, shape index: {1}]
  %5 = xla_tuple %s3, %s4
  %s6 = sld [smem:[#allocation0]]
  $region53: #{tpu_custom_call.1} parent=0
    _
  %s8 = ssub.s32 1, %s6
  %s9 = scalar_select 0, %s8, %s6
  $region1: #{tpu_custom_call.1} parent=0
    #allocation2 [shape = 'u8[8192]{0}', space=vmem, size = 0x2000, scoped, tag = 'output window, operand 0']
    #allocation3 [shape = 's32[2]{0}', space=sflag, size = 0x8, scoped, tag = 'scoped memory for tpu_custom_call.1']
    %10 = vsyncpa [#allocation3], 0
    %s11 = scalar_lea.sflag [#allocation3], 1
    %12 = vsyncpa %s11, 0
    loop: start=0, step=1, limit=4
    $region2: #{tpu_custom_call.1} parent=1 // loop_pre_header
      _
    $region3: #{tpu_custom_call.1} parent=1 // loop_header
      %s14 = sphi 0, %s18
      %p15 = scmp.ge.s32.totalorder %s14, 4
      %s24 = sphi 0, %s26
      %s27 = sphi 0, %s24
      %s28 = sphi 0, %s27
      %s44 = sphi 0, %s28
      %s50 = sphi 0, %s52
      %s53 = sphi 0, %s50
      %s54 = sphi 0, %s53
      %s70 = sphi 0, %s54
      %s74 = sphi 0, %s74
      %s76 = sphi 0, %s74
      %s77 = sphi 0, %s76
      %s91 = sphi 0, %s77
      %s97 = sphi 0, %s99
      %s100 = sphi 0, %s97
      %s101 = sphi 0, %s100
      %s117 = sphi 0, %s101
      %s123 = sphi 0, %s125
      %s126 = sphi 0, %s123
      %s127 = sphi 0, %s126
      %s143 = sphi 0, %s127
    $region4: #{tpu_custom_call.1} parent=1 // loop_header_branch
      %17 = sbr.rel (%p15) target = $region8
    $region5: #{tpu_custom_call.1} parent=1 // loop_body
      %s19 = ssub.s32 %s14, 1
      %s20 = ssub.s32 %s14, 2
      %s21 = sadd.s32 %s14, 1
      %s22 = ssub.s32 %s14, %s21
      %p23 = scmp.eq.s32.totalorder %s22, 0
      %s25 = sadd.s32 %s24, 1
      %s26 = scalar_select %p23, %s24, %s25
      %p29 = pneg %p23
      %p30 = scmp.eq.s32.totalorder %s14, 1
      %p31 = por %p29, %p30
      %p32 = scmp.ne.s32.totalorder %s24, %s27
      %p33 = scmp.eq.s32.totalorder %s14, 0
      %p34 = por %p32, %p33
      %p35 = scmp.ne.s32.totalorder %s24, %s27
      %p36 = scmp.eq.s32.totalorder %s19, 1
      %p37 = por %p35, %p36
      %p38 = scmp.ne.s32.totalorder %s27, %s28
      %p39 = scmp.eq.s32.totalorder %s19, 0
      %p40 = por %p38, %p39
      %p41 = scmp.ne.s32.totalorder %s27, %s28
      %p42 = scmp.eq.s32.totalorder %s20, 1
      %p43 = por %p41, %p42
      %p45 = scmp.ne.s32.totalorder %s28, %s44
      %p46 = scmp.eq.s32.totalorder %s20, 0
      %p47 = por %p45, %p46
      %s48 = ssub.s32 %s14, %s21
      %p49 = scmp.eq.s32.totalorder %s48, 0
      %s51 = sadd.s32 %s50, 1
      %s52 = scalar_select %p49, %s50, %s51
      %p55 = pneg %p49
      %p56 = scmp.eq.s32.totalorder %s14, 1
      %p57 = por %p55, %p56
      %p58 = scmp.ne.s32.totalorder %s50, %s53
      %p59 = scmp.eq.s32.totalorder %s14, 0
      %p60 = por %p58, %p59
      %p61 = scmp.ne.s32.totalorder %s50, %s53
      %p62 = scmp.eq.s32.totalorder %s19, 1
      %p63 = por %p61, %p62
      %p64 = scmp.ne.s32.totalorder %s53, %s54
      %p65 = scmp.eq.s32.totalorder %s19, 0
      %p66 = por %p64, %p65
      %p67 = scmp.ne.s32.totalorder %s53, %s54
      %p68 = scmp.eq.s32.totalorder %s20, 1
      %p69 = por %p67, %p68
      %p71 = scmp.ne.s32.totalorder %s54, %s70
      %p72 = scmp.eq.s32.totalorder %s20, 0
      %p73 = por %p71, %p72
      %s75 = sadd.s32 %s74, 1
      %p78 = scmp.eq.s32.totalorder %s14, 1
      %p79 = scmp.ne.s32.totalorder %s74, %s76
      %p80 = scmp.eq.s32.totalorder %s14, 0
      %p81 = por %p79, %p80
      %p82 = scmp.ne.s32.totalorder %s74, %s76
      %p83 = scmp.eq.s32.totalorder %s19, 1
      %p84 = por %p82, %p83
      %p85 = scmp.ne.s32.totalorder %s76, %s77
      %p86 = scmp.eq.s32.totalorder %s19, 0
      %p87 = por %p85, %p86
      %p88 = scmp.ne.s32.totalorder %s76, %s77
      %p89 = scmp.eq.s32.totalorder %s20, 1
      %p90 = por %p88, %p89
      %p92 = scmp.ne.s32.totalorder %s77, %s91
      %p93 = scmp.eq.s32.totalorder %s20, 0
      %p94 = por %p92, %p93
      %s95 = ssub.s32 %s14, %s21
      %p96 = scmp.eq.s32.totalorder %s95, 0
      %s98 = sadd.s32 %s97, 1
      %s99 = scalar_select %p96, %s97, %s98
      %p102 = pneg %p96
      %p103 = scmp.eq.s32.totalorder %s14, 1
      %p104 = por %p102, %p103
      %p105 = scmp.ne.s32.totalorder %s97, %s100
      %p106 = scmp.eq.s32.totalorder %s14, 0
      %p107 = por %p105, %p106
      %p108 = scmp.ne.s32.totalorder %s97, %s100
      %p109 = scmp.eq.s32.totalorder %s19, 1
      %p110 = por %p108, %p109
      %p111 = scmp.ne.s32.totalorder %s100, %s101
      %p112 = scmp.eq.s32.totalorder %s19, 0
      %p113 = por %p111, %p112
      %p114 = scmp.ne.s32.totalorder %s100, %s101
      %p115 = scmp.eq.s32.totalorder %s20, 1
      %p116 = por %p114, %p115
      %p118 = scmp.ne.s32.totalorder %s101, %s117
      %p119 = scmp.eq.s32.totalorder %s20, 0
      %p120 = por %p118, %p119
      %s121 = ssub.s32 %s14, %s21
      %p122 = scmp.eq.s32.totalorder %s121, 0
      %s124 = sadd.s32 %s123, 1
      %s125 = scalar_select %p122, %s123, %s124
      %p128 = pneg %p122
      %p129 = scmp.eq.s32.totalorder %s14, 1
      %p130 = por %p128, %p129
      %p131 = scmp.ne.s32.totalorder %s123, %s126
      %p132 = scmp.eq.s32.totalorder %s14, 0
      %p133 = por %p131, %p132
      %p134 = scmp.ne.s32.totalorder %s123, %s126
      %p135 = scmp.eq.s32.totalorder %s19, 1
      %p136 = por %p134, %p135
      %p137 = scmp.ne.s32.totalorder %s126, %s127
      %p138 = scmp.eq.s32.totalorder %s19, 0
      %p139 = por %p137, %p138
      %p140 = scmp.ne.s32.totalorder %s126, %s127
      %p141 = scmp.eq.s32.totalorder %s20, 1
      %p142 = por %p140, %p141
      %p144 = scmp.ne.s32.totalorder %s127, %s143
      %p145 = scmp.eq.s32.totalorder %s20, 0
      %p146 = por %p144, %p145
      %p147 = scmp.le.s32.totalorder 1, %s14
      %p148 = scmp.lt.s32.totalorder %s14, 3
      %p149 = pnand %p147, %p148
      %p150 = pneg %p149
      // Predicated region
      $region9: #{tpu_custom_call.1} parent=5 // pred_check
        _
      $region10: #{tpu_custom_call.1} parent=5 // pred_check_branch
        %152 = sbr.rel (%p149) target = $region12
      $region11: #{tpu_custom_call.1} parent=5 // pred_region
        %s153 = ssub.s32 %s14, 1
        // Predicated region
        $region13: #{tpu_custom_call.1} parent=11 // pred_check
          %p154 = pneg %p87
        $region14: #{tpu_custom_call.1} parent=11 // pred_check_branch
          %156 = sbr.rel (%p154) target = $region16
        $region15: #{tpu_custom_call.1} parent=11 // pred_region
          _
        $region16: #{tpu_custom_call.1} parent=11 // pred_fallthru
          _
      $region12: #{tpu_custom_call.1} parent=5 // pred_fallthru
        _
      %p157 = scmp.lt.s32.totalorder %s14, 2
      // Predicated region
      $region17: #{tpu_custom_call.1} parent=5 // pred_check
        %p158 = pneg %p157
      $region18: #{tpu_custom_call.1} parent=5 // pred_check_branch
        %160 = sbr.rel (%p158) target = $region20
      $region19: #{tpu_custom_call.1} parent=5 // pred_region
        // Predicated region
        $region21: #{tpu_custom_call.1} parent=19 // pred_check
          %p161 = pneg %p34
        $region22: #{tpu_custom_call.1} parent=19 // pred_check_branch
          %163 = sbr.rel (%p161) target = $region24
        $region23: #{tpu_custom_call.1} parent=19 // pred_region
          %p164 = scmp.lt.s32.totalorder %s14, 1
          %s165 = scalar_select %p164, %s14, 1
          %s166 = smul.addr %s165, 8
          %s167 = scalar_lea.vmem %s0, %s166
        $region24: #{tpu_custom_call.1} parent=19 // pred_fallthru
          _
        // Predicated region
        $region25: #{tpu_custom_call.1} parent=19 // pred_check
          %p168 = pneg %p60
        $region26: #{tpu_custom_call.1} parent=19 // pred_check_branch
          %170 = sbr.rel (%p168) target = $region28
        $region27: #{tpu_custom_call.1} parent=19 // pred_region
          %p171 = scmp.lt.s32.totalorder %s14, 1
          %s172 = scalar_select %p171, %s14, 1
          %s173 = smul.addr %s172, 8
          %s174 = scalar_lea.vmem %s1, %s173
        $region28: #{tpu_custom_call.1} parent=19 // pred_fallthru
          _
      $region20: #{tpu_custom_call.1} parent=5 // pred_fallthru
        _
      %p175 = scmp.le.s32.totalorder 1, %s14
      %p176 = scmp.lt.s32.totalorder %s14, 3
      %p177 = pnand %p175, %p176
      %p178 = pneg %p177
      // Predicated region
      $region29: #{tpu_custom_call.1} parent=5 // pred_check
        _
      $region30: #{tpu_custom_call.1} parent=5 // pred_check_branch
        %180 = sbr.rel (%p177) target = $region32
      $region31: #{tpu_custom_call.1} parent=5 // pred_region
        %s181 = ssub.s32 %s14, 1
        %p182 = scmp.lt.s32.totalorder %s19, 1
        %s183 = scalar_select %p182, %s19, 1
        %s184 = smul.addr %s183, 8
        %s185 = scalar_lea.vmem %s0, %s184
        %p186 = pneg %p40
        %p187 = pneg %p37
        %p188 = scmp.lt.s32.totalorder %s19, 1
        %s189 = scalar_select %p188, %s19, 1
        %s190 = smul.addr %s189, 8
        %s191 = scalar_lea.vmem %s1, %s190
        %p192 = pneg %p66
        %p193 = pneg %p63
        %p194 = pneg %p87
        %p195 = pneg %p84
        %p196 = pneg %p113
        %p197 = pneg %p110
        %s198 = sand.u32 %s100, 1
        %s199 = scalar_lea.sflag [#allocation3], %s198
        %s200 = sand.u32 %s100, 1
        %s201 = smul.addr %s200, 8
        %s202 = scalar_lea.vmem [#allocation2], %s201
        %p203 = pneg %p139
        %p204 = pneg %p136
        %p205 = scmp.lt.s32.totalorder %s19, 1
        %s206 = scalar_select %p205, %s19, 1
        %s207 = smul.addr %s206, 8
        %s208 = scalar_lea.vmem %s4, %s207
        %p209 = scmp.lt.s32.totalorder %s19, 1
        %s210 = scalar_select %p209, %s19, 1
        %s211 = smul.addr %s210, 8
        %s212 = scalar_lea.vmem %s0, %s211
        %p213 = scmp.lt.s32.totalorder %s19, 1
        %s214 = scalar_select %p213, %s19, 1
        %s215 = smul.addr %s214, 8
        %s216 = scalar_lea.vmem %s1, %s215
        %p217 = scmp.lt.s32.totalorder %s19, 1
        %s218 = scalar_select %p217, %s19, 1
        %s219 = smul.addr %s218, 8
        %s220 = scalar_lea.vmem %s4, %s219
        %v221 = vlaneseq
        %v222 = vand.u32 %v221, 127
        %v223 = vld [vmem:[%s212] sm:$0xff]
        %224 = vset.pattern.permute.xlu0 0
        %225 = vperm.xlu0 %224, %v223
        %v226 = vpop.permute.xlu0 %225
        %vm227 = vcmp.eq.s32.totalorder %v222, %v226
        %v228 = vsel %vm227, 1, 0
        %v229 = vcvt.s32.f32 %v228
        %v230 = vld [vmem:[%s2] sm:$0xff]
        %v231 = vld [vmem:[%s2 + $0x8] sm:$0xff]
        %v232 = vld [vmem:[%s2 + $0x10] sm:$0xff]
        %v233 = vld [vmem:[%s2 + $0x18] sm:$0xff]
        %v234 = vld [vmem:[%s2 + $0x20] sm:$0xff]
        %v235 = vld [vmem:[%s2 + $0x28] sm:$0xff]
        %v236 = vld [vmem:[%s2 + $0x30] sm:$0xff]
        %v237 = vld [vmem:[%s2 + $0x38] sm:$0xff]
        %v238 = vld [vmem:[%s2 + $0x40] sm:$0xff]
        %v239 = vld [vmem:[%s2 + $0x48] sm:$0xff]
        %v240 = vld [vmem:[%s2 + $0x50] sm:$0xff]
        %v241 = vld [vmem:[%s2 + $0x58] sm:$0xff]
        %v242 = vld [vmem:[%s2 + $0x60] sm:$0xff]
        %v243 = vld [vmem:[%s2 + $0x68] sm:$0xff]
        %v244 = vld [vmem:[%s2 + $0x70] sm:$0xff]
        %v245 = vld [vmem:[%s2 + $0x78] sm:$0xff]
        %246 = vmatprep.subr.mxu0 0.0
        %247 = vmatpush1.msra.mxu0 %v245
        %248 = vmatprep.subr.mxu0 0.0
        %249 = vmatpush1.msra.mxu0 %v244
        %250 = vmatprep.subr.mxu0 0.0
        %251 = vmatpush1.msra.mxu0 %v243
        %252 = vmatprep.subr.mxu0 0.0
        %253 = vmatpush1.msra.mxu0 %v242
        %254 = vmatprep.subr.mxu0 0.0
        %255 = vmatpush1.msra.mxu0 %v241
        %256 = vmatprep.subr.mxu0 0.0
        %257 = vmatpush1.msra.mxu0 %v240
        %258 = vmatprep.subr.mxu0 0.0
        %259 = vmatpush1.msra.mxu0 %v239
        %260 = vmatprep.subr.mxu0 0.0
        %261 = vmatpush1.msra.mxu0 %v238
        %262 = vmatprep.subr.mxu0 0.0
        %263 = vmatpush1.msra.mxu0 %v237
        %264 = vmatprep.subr.mxu0 0.0
        %265 = vmatpush1.msra.mxu0 %v236
        %266 = vmatprep.subr.mxu0 0.0
        %267 = vmatpush1.msra.mxu0 %v235
        %268 = vmatprep.subr.mxu0 0.0
        %269 = vmatpush1.msra.mxu0 %v234
        %270 = vmatprep.subr.mxu0 0.0
        %271 = vmatpush1.msra.mxu0 %v233
        %272 = vmatprep.subr.mxu0 0.0
        %273 = vmatpush1.msra.mxu0 %v232
        %274 = vmatprep.subr.mxu0 0.0
        %275 = vmatpush1.msra.mxu0 %v231
        %276 = vmatprep.subr.mxu0 0.0
        %277 = vmatpush1.msra.mxu0 %v230
        %278 = vmatprep.subr.mxu0 0.0
        %279 = vmatpush2.msra.mxu0 0.0
        %280 = vmatprep.subr.mxu0 0.0
        %281 = vmatpush2.msra.mxu0 0.0
        %282 = vmatprep.subr.mxu0 0.0
        %283 = vmatpush2.msra.mxu0 0.0
        %284 = vmatprep.subr.mxu0 0.0
        %285 = vmatpush2.msra.mxu0 0.0
        %286 = vmatprep.subr.mxu0 0.0
        %287 = vmatpush2.msra.mxu0 0.0
        %288 = vmatprep.subr.mxu0 0.0
        %289 = vmatpush2.msra.mxu0 0.0
        %290 = vmatprep.subr.mxu0 0.0
        %291 = vmatpush2.msra.mxu0 0.0
        %292 = vmatprep.subr.mxu0 0.0
        %293 = vmatpush2.msra.mxu0 0.0
        %294 = vmatprep.subr.mxu0 0.0
        %295 = vmatpush2.msra.mxu0 0.0
        %296 = vmatprep.subr.mxu0 0.0
        %297 = vmatpush2.msra.mxu0 0.0
        %298 = vmatprep.subr.mxu0 0.0
        %299 = vmatpush2.msra.mxu0 0.0
        %300 = vmatprep.subr.mxu0 0.0
        %301 = vmatpush2.msra.mxu0 0.0
        %302 = vmatprep.subr.mxu0 0.0
        %303 = vmatpush2.msra.mxu0 0.0
        %304 = vmatprep.subr.mxu0 0.0
        %305 = vmatpush2.msra.mxu0 0.0
        %306 = vmatprep.subr.mxu0 0.0
        %307 = vmatpush2.msra.mxu0 0.0
        %308 = vmatprep.subr.mxu0 0.0
        %309 = vmatpush2.msra.mxu0 0.0
        %310 = vmatprep.mubr.f32.mxu0 0.0
        %311 = vmatmul.mubr.f32.gmra.mxu0 %v229
        %v312 = vpop.f32.mrf.mxu0
        %v313 = vadd.f32 0.0, %v312
        %v314 = vpop.f32.mrf.mxu0
        %315 = vdwg.mxu0
        %vm316 = vcmask 261120
        %317 = vst.msk [vmem:[%s202] sm:$0xff] %vm316, %v313
        %v318 = vld [vmem:[%s216] sm:$0xff]
        %319 = vset.pattern.permute.xlu0 0
        %320 = vperm.xlu0 %319, %v318
        %v321 = vpop.permute.xlu0 %320
        %vm322 = vcmp.eq.s32.totalorder %v222, %v321
        %v323 = vsub.f32 0.0, %v313
        %vm324 = vcmp.eq.s32.totalorder %v222, 32
        %v325 = vsel %vm324, %v313, 0.0
        %v326 = vsel %vm322, %v323, %v325
        %vm327 = vcmask 269312
        %v328 = vsel %vm327, %v326, 0.0
        %329 = vadd.xlane.f32.xlu0 %v328
        %v330 = vpop.xlane.xlu0 %329
        %vm331 = vcmask 7168
        %332 = vst.msk [vmem:[%s220] sm:$0xff] %vm331, %v330
        %s333 = sand.u32 %s100, 1
        %s334 = scalar_lea.sflag [#allocation3], %s333
        %s335 = sand.u32 %s100, 1
        %s336 = smul.addr %s335, 8
        %s337 = scalar_lea.vmem [#allocation2], %s336
        %p338 = scmp.lt.s32.totalorder %s19, 1
        %s339 = scalar_select %p338, %s19, 1
        %s340 = smul.addr %s339, 8
        %s341 = scalar_lea.vmem %s4, %s340
        // Predicated region
        $region33: #{tpu_custom_call.1} parent=31 // pred_check
          %p342 = pneg %p110
        $region34: #{tpu_custom_call.1} parent=31 // pred_check_branch
          %344 = sbr.rel (%p342) target = $region36
        $region35: #{tpu_custom_call.1} parent=31 // pred_region
          %s346 = ssub.s32 128, 128
          %347 = vsyncadd %s334, %s346
          %s348 = smul.addr %s19, 128
          %s349 = scalar_lea.hbm %s3, %s348
          %s351 = sshll.u32 %s337, 4
          %s352 = int_to_ptr.vmem [resolvable:$true] %s351
          %354 = dma.vmem_to_hbm [thread:$0]  %s352, 128, %s349, %s334
        $region36: #{tpu_custom_call.1} parent=31 // pred_fallthru
          _
        // Predicated region
        $region37: #{tpu_custom_call.1} parent=31 // pred_check
          %p355 = pneg %p136
        $region38: #{tpu_custom_call.1} parent=31 // pred_check_branch
          %357 = sbr.rel (%p355) target = $region40
        $region39: #{tpu_custom_call.1} parent=31 // pred_region
          _
        $region40: #{tpu_custom_call.1} parent=31 // pred_fallthru
          _
      $region32: #{tpu_custom_call.1} parent=5 // pred_fallthru
        _
      %p358 = scmp.le.s32.totalorder 2, %s14
      // Predicated region
      $region41: #{tpu_custom_call.1} parent=5 // pred_check
        %p359 = pneg %p358
      $region42: #{tpu_custom_call.1} parent=5 // pred_check_branch
        %361 = sbr.rel (%p359) target = $region44
      $region43: #{tpu_custom_call.1} parent=5 // pred_region
        %s362 = ssub.s32 %s14, 2
        // Predicated region
        $region45: #{tpu_custom_call.1} parent=43 // pred_check
          %p363 = pneg %p116
        $region46: #{tpu_custom_call.1} parent=43 // pred_check_branch
          %365 = sbr.rel (%p363) target = $region48
        $region47: #{tpu_custom_call.1} parent=43 // pred_region
          %s366 = sand.u32 %s101, 1
          %s367 = scalar_lea.sflag [#allocation3], %s366
          %s368 = sand.u32 %s101, 1
          %s369 = smul.addr %s368, 8
          %s370 = scalar_lea.vmem [#allocation2], %s369
          %371 = dma.done %s367, 128
        $region48: #{tpu_custom_call.1} parent=43 // pred_fallthru
          _
        // Predicated region
        $region49: #{tpu_custom_call.1} parent=43 // pred_check
          %p372 = pneg %p142
        $region50: #{tpu_custom_call.1} parent=43 // pred_check_branch
          %374 = sbr.rel (%p372) target = $region52
        $region51: #{tpu_custom_call.1} parent=43 // pred_region
          %p375 = scmp.lt.s32.totalorder %s20, 1
          %s376 = scalar_select %p375, %s20, 1
          %s377 = smul.addr %s376, 8
          %s378 = scalar_lea.vmem %s4, %s377
        $region52: #{tpu_custom_call.1} parent=43 // pred_fallthru
          _
      $region44: #{tpu_custom_call.1} parent=5 // pred_fallthru
        _
    $region6: #{tpu_custom_call.1} parent=1 // loop_footer
      %s18 = sadd.s32 1, %s14
    $region7: #{tpu_custom_call.1} parent=1 // loop_footer_branch
      %13 = sbr.rel target = $region3
    $region8: #{tpu_custom_call.1} parent=1 // loop_exit
      _
    %379 = vsyncpa [#allocation3], 1
    %s380 = scalar_lea.sflag [#allocation3], 1
    %381 = vsyncpa %s380, 1

</llo_original>
